<compile_context>
chip_gen: v5e
topology: v5e:2x2
jax: 0.10.0
libtpu: 0.0.40
codegen_flags: <defaults>
</compile_context>

<pallas_src>
import jax
import jax.numpy as jnp
from jax.experimental import pallas as pl
from jax.experimental.pallas import tpu as pltpu

EPS = 1e-5


def _disc_kernel(x_ref, w1_ref, w2_ref, vecs_ref, b3_ref, o_ref):
    B = x_ref.shape[0]
    mm_dtype = w1_ref.dtype                 # f32 or bf16 (MXU input dtype)
    inv_b = jnp.float32(1.0 / B)

    # Packed 1-row f32 parameters: rows = [g1, be1, g2, be2, w3_row].
    v = vecs_ref[...]
    g1, be1 = v[0:1, :], v[1:2, :]
    g2, be2 = v[2:3, :], v[3:4, :]
    w3_row = v[4:5, :]
    b3 = b3_ref[0, 0]                       # scalar from SMEM

    # Column sums via the (otherwise idle) MXU instead of sublane reductions.
    ones_row = jnp.ones((1, B), jnp.float32)

    def bn_relu(h, g, be):
        s1 = jnp.dot(ones_row, h, preferred_element_type=jnp.float32)      # (1,H)
        s2 = jnp.dot(ones_row, h * h, preferred_element_type=jnp.float32)  # (1,H)
        mu = s1 * inv_b
        var = jnp.maximum(s2 * inv_b - mu * mu, 0.0)   # clamp: one-pass var >= 0
        scale = g * jax.lax.rsqrt(var + EPS)
        shift = be - mu * scale
        return jnp.maximum(h * scale + shift, 0.0)     # BN fold + ReLU (one FMA)

    # ---- Layer 1: Linear (bias cancelled by train-mode BN) + BN + ReLU ----
    h = jnp.dot(x_ref[...], w1_ref[...], preferred_element_type=jnp.float32)
    h = bn_relu(h, g1, be1)

    # ---- Layer 2: Linear (bias cancelled by train-mode BN) + BN + ReLU ----
    h = jnp.dot(h.astype(mm_dtype), w2_ref[...], preferred_element_type=jnp.float32)
    h = bn_relu(h, g2, be2)

    # ---- Layer 3: hidden -> 1, produced lane-dense as (1, B) directly ----
    # dot_general contracting both operands on their last (hidden) axis:
    # (1,H) x (B,H) -> (1,B); no explicit transpose, no (B,1) column store.
    zT = jax.lax.dot_general(w3_row, h, (((1,), (1,)), ((), ())),
                             preferred_element_type=jnp.float32) + b3
    # Sigmoid via EUP tanh (no VALU divide): sigmoid(z) = 0.5*tanh(z/2) + 0.5.
    o_ref[...] = (0.5 * jnp.tanh(0.5 * zT) + 0.5).astype(o_ref.dtype)


def pack_params(params, use_bf16_matmul=False):
    """One-time parameter prep (hoisted out of the per-call path).

    Returns (w1, w2, vecs, b3) with vecs = [g1; be1; g2; be2; w3_row] (5, H)
    f32 and weights cast to bf16 if requested (v6e/v7x MXU recommendation).
    b1/b2 are dropped: exactly cancelled by train-mode BatchNorm.
    """
    (w1, b1, g1, be1, w2, b2, g2, be2, w3, b3) = params
    del b1, b2
    H = w1.shape[1]
    mm_dtype = jnp.bfloat16 if use_bf16_matmul else jnp.float32
    vecs = jnp.concatenate(
        [g1, be1, g2, be2, w3.reshape(1, H)], axis=0).astype(jnp.float32)
    return (w1.astype(mm_dtype), w2.astype(mm_dtype), vecs,
            b3.reshape(1, 1).astype(jnp.float32))


@jax.jit
def discriminator_forward(x, packed):
    """x: (B, input_dim) float32, packed = pack_params(...) -> (B, 1) float32."""
    w1, w2, vecs, b3 = packed
    B = x.shape[0]
    H = w1.shape[1]
    x = x.astype(w1.dtype)   # match MXU input dtype (f32 or bf16)

    # Explicit VMEM budget sized from the actual footprint (inputs + output +
    # f32 intermediates), so larger B/H lift the default scoped-VMEM ceiling.
    in_bytes = sum(int(a.size) * a.dtype.itemsize for a in (x, w1, w2, vecs, b3))
    interm_bytes = 4 * B * H * 4          # h / h*h style f32 temporaries
    footprint = in_bytes + interm_bytes + B * 4
    vmem_limit = int(min(max(footprint * 2 + (1 << 20), 16 << 20), 128 << 20))

    out_t = pl.pallas_call(
        _disc_kernel,
        out_shape=jax.ShapeDtypeStruct((1, B), jnp.float32),   # lane-dense
        in_specs=[
            pl.BlockSpec(memory_space=pltpu.MemorySpace.VMEM),  # x
            pl.BlockSpec(memory_space=pltpu.MemorySpace.VMEM),  # w1
            pl.BlockSpec(memory_space=pltpu.MemorySpace.VMEM),  # w2
            pl.BlockSpec(memory_space=pltpu.MemorySpace.VMEM),  # vecs
            pl.BlockSpec(memory_space=pltpu.MemorySpace.SMEM),  # b3 scalar
        ],
        out_specs=pl.BlockSpec(memory_space=pltpu.MemorySpace.VMEM),
        compiler_params=pltpu.CompilerParams(vmem_limit_bytes=vmem_limit),
    )(x, w1, w2, vecs, b3)
    return out_t.reshape(B, 1)


def init_params(key, input_dim, hidden_dim):
    """Deterministic synthetic parameters (PyTorch-like, weights stored transposed)."""
    ks = jax.random.split(key, 6)
    w1 = jax.random.normal(ks[0], (input_dim, hidden_dim), jnp.float32) * 0.1
    b1 = jax.random.normal(ks[1], (1, hidden_dim), jnp.float32) * 0.1
    g1 = jnp.ones((1, hidden_dim), jnp.float32)    # BatchNorm1d weight
    be1 = jnp.zeros((1, hidden_dim), jnp.float32)  # BatchNorm1d bias

    w2 = jax.random.normal(ks[2], (hidden_dim, hidden_dim), jnp.float32) * 0.1
    b2 = jax.random.normal(ks[3], (1, hidden_dim), jnp.float32) * 0.1
    g2 = jnp.ones((1, hidden_dim), jnp.float32)
    be2 = jnp.zeros((1, hidden_dim), jnp.float32)

    w3 = jax.random.normal(ks[4], (hidden_dim, 1), jnp.float32) * 0.1
    b3 = jax.random.normal(ks[5], (1, 1), jnp.float32) * 0.1
    return (w1, b1, g1, be1, w2, b2, g2, be2, w3, b3)


def reference_forward(x, params):
    """Pure-JAX reference mirroring the PyTorch module (train-mode BN, biases kept)."""
    (w1, b1, g1, be1, w2, b2, g2, be2, w3, b3) = params

    def bn(h, g, b):
        mu = jnp.mean(h, axis=0, keepdims=True)
        var = jnp.mean((h - mu) ** 2, axis=0, keepdims=True)  # biased, eps=1e-5
        return (h - mu) / jnp.sqrt(var + EPS) * g + b

    h = x @ w1 + b1
    h = jnp.maximum(bn(h, g1, be1), 0.0)
    h = h @ w2 + b2
    h = jnp.maximum(bn(h, g2, be2), 0.0)
    z = h @ w3 + b3
    return jax.nn.sigmoid(z)


if __name__ == "__main__":
    # Small shapes consistent with the module: Discriminator(input_dim=32, hidden_dim=32)
    B, INPUT_DIM, HIDDEN_DIM = 8, 32, 32

    key = jax.random.PRNGKey(0)
    kx, kp = jax.random.split(key)
    x = jax.random.normal(kx, (B, INPUT_DIM), jnp.float32)
    params = init_params(kp, INPUT_DIM, HIDDEN_DIM)
    ref = reference_forward(x, params)

    # f32 MXU-input path (exact match to the reference within f32 tolerance).
    packed_f32 = pack_params(params, use_bf16_matmul=False)
    out = jax.block_until_ready(discriminator_forward(x, packed_f32))
    assert out.shape == (B, 1), out.shape
    assert jnp.allclose(out, ref, atol=2e-5, rtol=2e-5), (out, ref)

    # bf16 MXU-input path (recommended on v6e/v7x): accuracy budget relaxed
    # explicitly — bf16 matmul inputs, f32 accumulation and f32 BN/sigmoid math.
    packed_bf16 = pack_params(params, use_bf16_matmul=True)
    out_bf16 = jax.block_until_ready(discriminator_forward(x, packed_bf16))
    assert out_bf16.shape == (B, 1), out_bf16.shape
    assert jnp.allclose(out_bf16, ref, atol=6e-2, rtol=0.0), (out_bf16, ref)

    print("KERNEL_OK")
</pallas_src>

<mosaic_0001>
module attributes {stable_mosaic.version = 11 : i64} {
  func.func @_disc_kernel(%arg0: memref<8x32xf32, #tpu.memory_space<vmem>>, %arg1: memref<32x32xf32, #tpu.memory_space<vmem>>, %arg2: memref<32x32xf32, #tpu.memory_space<vmem>>, %arg3: memref<5x32xf32, #tpu.memory_space<vmem>>, %arg4: memref<1x1xf32, #tpu.memory_space<smem>>, %arg5: memref<1x8xf32, #tpu.memory_space<vmem>>) attributes {dimension_semantics = [], scalar_prefetch = 0 : i64, scratch_operands = 0 : i64, tpu.core_type = #tpu.core_type<tc>} {
    %c0 = arith.constant 0 : index
    %c0_0 = arith.constant 0 : index
    %0 = vector.load %arg3[%c0, %c0_0] : memref<5x32xf32, #tpu.memory_space<vmem>>, vector<5x32xf32>
    %1 = vector.extract_strided_slice %0 {offsets = [0, 0], sizes = [1, 32], strides = [1, 1]} : vector<5x32xf32> to vector<1x32xf32>
    %2 = vector.extract_strided_slice %0 {offsets = [1, 0], sizes = [1, 32], strides = [1, 1]} : vector<5x32xf32> to vector<1x32xf32>
    %3 = vector.extract_strided_slice %0 {offsets = [2, 0], sizes = [1, 32], strides = [1, 1]} : vector<5x32xf32> to vector<1x32xf32>
    %4 = vector.extract_strided_slice %0 {offsets = [3, 0], sizes = [1, 32], strides = [1, 1]} : vector<5x32xf32> to vector<1x32xf32>
    %5 = vector.extract_strided_slice %0 {offsets = [4, 0], sizes = [1, 32], strides = [1, 1]} : vector<5x32xf32> to vector<1x32xf32>
    %c0_1 = arith.constant 0 : index
    %c0_2 = arith.constant 0 : index
    %6 = memref.load %arg4[%c0_1, %c0_2] : memref<1x1xf32, #tpu.memory_space<smem>>
    %cst = arith.constant 1.000000e+00 : f32
    %7 = vector.broadcast %cst : f32 to vector<1x8xf32>
    %c0_3 = arith.constant 0 : index
    %c0_4 = arith.constant 0 : index
    %8 = vector.load %arg0[%c0_3, %c0_4] : memref<8x32xf32, #tpu.memory_space<vmem>>, vector<8x32xf32>
    %c0_5 = arith.constant 0 : index
    %c0_6 = arith.constant 0 : index
    %9 = vector.load %arg1[%c0_5, %c0_6] : memref<32x32xf32, #tpu.memory_space<vmem>>, vector<32x32xf32>
    %cst_7 = arith.constant dense<0.000000e+00> : vector<8x32xf32>
    %10 = tpu.matmul %8, %9, %cst_7 {dimension_numbers = #tpu.dot_dimension_numbers<[1], [0], [0], [1], [0, 0, 1, 1], [], []>} : vector<8x32xf32>, vector<32x32xf32>, vector<8x32xf32> -> vector<8x32xf32>
    %cst_8 = arith.constant dense<0.000000e+00> : vector<1x32xf32>
    %11 = tpu.matmul %7, %10, %cst_8 {dimension_numbers = #tpu.dot_dimension_numbers<[1], [0], [0], [1], [0, 0, 1, 1], [], []>} : vector<1x8xf32>, vector<8x32xf32>, vector<1x32xf32> -> vector<1x32xf32>
    %12 = arith.mulf %10, %10 : vector<8x32xf32>
    %cst_9 = arith.constant dense<0.000000e+00> : vector<1x32xf32>
    %13 = tpu.matmul %7, %12, %cst_9 {dimension_numbers = #tpu.dot_dimension_numbers<[1], [0], [0], [1], [0, 0, 1, 1], [], []>} : vector<1x8xf32>, vector<8x32xf32>, vector<1x32xf32> -> vector<1x32xf32>
    %cst_10 = arith.constant 1.250000e-01 : f32
    %14 = vector.broadcast %cst_10 : f32 to vector<1x32xf32>
    %15 = arith.mulf %11, %14 : vector<1x32xf32>
    %cst_11 = arith.constant 1.250000e-01 : f32
    %16 = vector.broadcast %cst_11 : f32 to vector<1x32xf32>
    %17 = arith.mulf %13, %16 : vector<1x32xf32>
    %18 = arith.mulf %15, %15 : vector<1x32xf32>
    %19 = arith.subf %17, %18 : vector<1x32xf32>
    %cst_12 = arith.constant 0.000000e+00 : f32
    %20 = vector.broadcast %cst_12 : f32 to vector<1x32xf32>
    %21 = arith.maximumf %19, %20 : vector<1x32xf32>
    %cst_13 = arith.constant 9.99999974E-6 : f32
    %22 = vector.broadcast %cst_13 : f32 to vector<1x32xf32>
    %23 = arith.addf %21, %22 : vector<1x32xf32>
    %24 = math.rsqrt %23 : vector<1x32xf32>
    %25 = arith.mulf %1, %24 : vector<1x32xf32>
    %26 = arith.mulf %15, %25 : vector<1x32xf32>
    %27 = arith.subf %2, %26 : vector<1x32xf32>
    %28 = vector.broadcast %25 : vector<1x32xf32> to vector<8x32xf32>
    %29 = arith.mulf %10, %28 : vector<8x32xf32>
    %30 = vector.broadcast %27 : vector<1x32xf32> to vector<8x32xf32>
    %31 = arith.addf %29, %30 : vector<8x32xf32>
    %cst_14 = arith.constant 0.000000e+00 : f32
    %32 = vector.broadcast %cst_14 : f32 to vector<8x32xf32>
    %33 = arith.maximumf %31, %32 : vector<8x32xf32>
    %c0_15 = arith.constant 0 : index
    %c0_16 = arith.constant 0 : index
    %34 = vector.load %arg2[%c0_15, %c0_16] : memref<32x32xf32, #tpu.memory_space<vmem>>, vector<32x32xf32>
    %cst_17 = arith.constant dense<0.000000e+00> : vector<8x32xf32>
    %35 = tpu.matmul %33, %34, %cst_17 {dimension_numbers = #tpu.dot_dimension_numbers<[1], [0], [0], [1], [0, 0, 1, 1], [], []>} : vector<8x32xf32>, vector<32x32xf32>, vector<8x32xf32> -> vector<8x32xf32>
    %cst_18 = arith.constant dense<0.000000e+00> : vector<1x32xf32>
    %36 = tpu.matmul %7, %35, %cst_18 {dimension_numbers = #tpu.dot_dimension_numbers<[1], [0], [0], [1], [0, 0, 1, 1], [], []>} : vector<1x8xf32>, vector<8x32xf32>, vector<1x32xf32> -> vector<1x32xf32>
    %37 = arith.mulf %35, %35 : vector<8x32xf32>
    %cst_19 = arith.constant dense<0.000000e+00> : vector<1x32xf32>
    %38 = tpu.matmul %7, %37, %cst_19 {dimension_numbers = #tpu.dot_dimension_numbers<[1], [0], [0], [1], [0, 0, 1, 1], [], []>} : vector<1x8xf32>, vector<8x32xf32>, vector<1x32xf32> -> vector<1x32xf32>
    %cst_20 = arith.constant 1.250000e-01 : f32
    %39 = vector.broadcast %cst_20 : f32 to vector<1x32xf32>
    %40 = arith.mulf %36, %39 : vector<1x32xf32>
    %cst_21 = arith.constant 1.250000e-01 : f32
    %41 = vector.broadcast %cst_21 : f32 to vector<1x32xf32>
    %42 = arith.mulf %38, %41 : vector<1x32xf32>
    %43 = arith.mulf %40, %40 : vector<1x32xf32>
    %44 = arith.subf %42, %43 : vector<1x32xf32>
    %cst_22 = arith.constant 0.000000e+00 : f32
    %45 = vector.broadcast %cst_22 : f32 to vector<1x32xf32>
    %46 = arith.maximumf %44, %45 : vector<1x32xf32>
    %cst_23 = arith.constant 9.99999974E-6 : f32
    %47 = vector.broadcast %cst_23 : f32 to vector<1x32xf32>
    %48 = arith.addf %46, %47 : vector<1x32xf32>
    %49 = math.rsqrt %48 : vector<1x32xf32>
    %50 = arith.mulf %3, %49 : vector<1x32xf32>
    %51 = arith.mulf %40, %50 : vector<1x32xf32>
    %52 = arith.subf %4, %51 : vector<1x32xf32>
    %53 = vector.broadcast %50 : vector<1x32xf32> to vector<8x32xf32>
    %54 = arith.mulf %35, %53 : vector<8x32xf32>
    %55 = vector.broadcast %52 : vector<1x32xf32> to vector<8x32xf32>
    %56 = arith.addf %54, %55 : vector<8x32xf32>
    %cst_24 = arith.constant 0.000000e+00 : f32
    %57 = vector.broadcast %cst_24 : f32 to vector<8x32xf32>
    %58 = arith.maximumf %56, %57 : vector<8x32xf32>
    %cst_25 = arith.constant dense<0.000000e+00> : vector<1x8xf32>
    %59 = tpu.matmul %5, %58, %cst_25 {dimension_numbers = #tpu.dot_dimension_numbers<[1], [1], [0], [0], [0, 0, 1, 0], [], []>} : vector<1x32xf32>, vector<8x32xf32>, vector<1x8xf32> -> vector<1x8xf32>
    %60 = vector.broadcast %6 : f32 to vector<1x8xf32>
    %61 = arith.addf %59, %60 : vector<1x8xf32>
    %cst_26 = arith.constant 5.000000e-01 : f32
    %62 = vector.broadcast %cst_26 : f32 to vector<1x8xf32>
    %63 = arith.mulf %62, %61 : vector<1x8xf32>
    %64 = math.tanh %63 : vector<1x8xf32>
    %cst_27 = arith.constant 5.000000e-01 : f32
    %65 = vector.broadcast %cst_27 : f32 to vector<1x8xf32>
    %66 = arith.mulf %65, %64 : vector<1x8xf32>
    %cst_28 = arith.constant 5.000000e-01 : f32
    %67 = vector.broadcast %cst_28 : f32 to vector<1x8xf32>
    %68 = arith.addf %66, %67 : vector<1x8xf32>
    %c0_29 = arith.constant 0 : index
    %c0_30 = arith.constant 0 : index
    %69 = vector.load %arg5[%c0_29, %c0_30] : memref<1x8xf32, #tpu.memory_space<vmem>>, vector<1x8xf32>
    tpu.vector_store %arg5[%c0_29, %c0_30], %68 {strides = array<i32>} : memref<1x8xf32, #tpu.memory_space<vmem>>, vector<1x8xf32>,
    return
  }
}

</mosaic_0001>

<llo_original>
// kernel: discriminator_forward.1
$region0: #{discriminator_forward.1}
  #allocation0 [shape = 'u32[]', space=smem, size = 0x4, offset = 0x4, fixed_abs, tag = 'smem constant byte address 0x4 - core index']
  #allocation1 [shape = 'u32[72,128]{1,0:T(1,128)}', space=vmem, size = 0x9000, scoped, tag = 'internal scratch']
  #allocation2 [shape = 'f32[1,1]{1,0:T(1,128)S(6)}', space=smem, size = 0x200, scoped, tag = 'scoped memory for discriminator_forward.1']
  %s0 = inlined_call_operand.hbm [shape: f32[8,32], index: 0, kind: input, shape index: {}]
  %s1 = inlined_call_operand.hbm [shape: f32[32,32], index: 1, kind: input, shape index: {}]
  %s2 = inlined_call_operand.hbm [shape: f32[32,32], index: 2, kind: input, shape index: {}]
  %s3 = inlined_call_operand.hbm [shape: f32[5,32], index: 3, kind: input, shape index: {}]
  %s4 = inlined_call_operand.<no memory space> [shape: f32[1,1], index: 4, kind: input, shape index: {}]
  %s5 = inlined_call_operand.hbm [shape: f32[1,8], index: 5, kind: output, shape index: {}]
  %s6 = sld [smem:[#allocation0]]
  $region46: #{discriminator_forward.1} parent=0
    _
  %s8 = ssub.s32 1, %s6
  %s9 = scalar_select 0, %s8, %s6
  %10 = sst [smem:[#allocation2]] %s4
  $region1: #{discriminator_forward.1} parent=0
    #allocation3 [shape = 'u8[4096]{0}', space=vmem, size = 0x1000, scoped, tag = 'input window, operand 0, single buffered']
    #allocation4 [shape = 's32[1]{0}', space=sflag, size = 0x4, scoped, tag = 'scoped memory for discriminator_forward.1']
    #allocation5 [shape = 's32[1]{0}', space=sflag, size = 0x4, scoped, tag = 'scoped memory for discriminator_forward.1']
    #allocation6 [shape = 'u8[16384]{0}', space=vmem, size = 0x4000, scoped, tag = 'input window, operand 1, single buffered']
    #allocation7 [shape = 's32[1]{0}', space=sflag, size = 0x4, scoped, tag = 'scoped memory for discriminator_forward.1']
    #allocation8 [shape = 'u8[16384]{0}', space=vmem, size = 0x4000, scoped, tag = 'input window, operand 2, single buffered']
    #allocation9 [shape = 'u8[4096]{0}', space=vmem, size = 0x1000, scoped, tag = 'input window, operand 3, single buffered']
    #allocation10 [shape = 's32[1]{0}', space=sflag, size = 0x4, scoped, tag = 'scoped memory for discriminator_forward.1']
    #allocation11 [shape = 'u8[512]{0}', space=vmem, size = 0x400, scoped, tag = 'output window, operand 0, single buffered']
    %11 = vsyncpa [#allocation4], 0
    %12 = vsyncpa [#allocation7], 0
    %13 = vsyncpa [#allocation10], 0
    %14 = vsyncpa [#allocation5], 0
    // Predicated region
    $region2: #{discriminator_forward.1} parent=1 // pred_check
      _
    $region3: #{discriminator_forward.1} parent=1 // pred_check_branch
      %16 = sbr.rel (0) target = $region5
    $region4: #{discriminator_forward.1} parent=1 // pred_region
      %18 = vsyncadd [#allocation4], 0
      %s20 = sshll.u32 %s0, 4
      %s21 = int_to_ptr.hbm [resolvable:$true] %s20
      %s22 = sshll.u32 [#allocation3], 4
      %s23 = int_to_ptr.vmem [resolvable:$true] %s22
      %25 = dma.hbm_to_vmem [thread:$0]  %s21, 128, %s23, [#allocation4]
    $region5: #{discriminator_forward.1} parent=1 // pred_fallthru
      _
    // Predicated region
    $region6: #{discriminator_forward.1} parent=1 // pred_check
      _
    $region7: #{discriminator_forward.1} parent=1 // pred_check_branch
      %27 = sbr.rel (0) target = $region9
    $region8: #{discriminator_forward.1} parent=1 // pred_region
      %29 = vsyncadd [#allocation7], 0
      %s30 = sshll.u32 %s1, 4
      %s31 = int_to_ptr.hbm [resolvable:$true] %s30
      %s32 = sshll.u32 [#allocation6], 4
      %s33 = int_to_ptr.vmem [resolvable:$true] %s32
      %38 = dma.hbm_to_vmem [thread:$0]  %s31, 512, %s33, [#allocation7], 128, 128, 8
    $region9: #{discriminator_forward.1} parent=1 // pred_fallthru
      _
    // Predicated region
    $region10: #{discriminator_forward.1} parent=1 // pred_check
      _
    $region11: #{discriminator_forward.1} parent=1 // pred_check_branch
      %40 = sbr.rel (0) target = $region13
    $region12: #{discriminator_forward.1} parent=1 // pred_region
      %42 = vsyncadd [#allocation7], 0
      %s43 = sshll.u32 %s2, 4
      %s44 = int_to_ptr.hbm [resolvable:$true] %s43
      %s45 = sshll.u32 [#allocation8], 4
      %s46 = int_to_ptr.vmem [resolvable:$true] %s45
      %51 = dma.hbm_to_vmem [thread:$0]  %s44, 512, %s46, [#allocation7], 128, 128, 8
    $region13: #{discriminator_forward.1} parent=1 // pred_fallthru
      _
    // Predicated region
    $region14: #{discriminator_forward.1} parent=1 // pred_check
      _
    $region15: #{discriminator_forward.1} parent=1 // pred_check_branch
      %53 = sbr.rel (0) target = $region17
    $region16: #{discriminator_forward.1} parent=1 // pred_region
      %55 = vsyncadd [#allocation10], 0
      %s57 = sshll.u32 %s3, 4
      %s58 = int_to_ptr.hbm [resolvable:$true] %s57
      %s59 = sshll.u32 [#allocation9], 4
      %s60 = int_to_ptr.vmem [resolvable:$true] %s59
      %62 = dma.hbm_to_vmem [thread:$0]  %s58, 128, %s60, [#allocation10]
    $region17: #{discriminator_forward.1} parent=1 // pred_fallthru
      _
    // Predicated region
    $region18: #{discriminator_forward.1} parent=1 // pred_check
      _
    $region19: #{discriminator_forward.1} parent=1 // pred_check_branch
      %64 = sbr.rel (0) target = $region21
    $region20: #{discriminator_forward.1} parent=1 // pred_region
      _
    $region21: #{discriminator_forward.1} parent=1 // pred_fallthru
      _
    // Predicated region
    $region22: #{discriminator_forward.1} parent=1 // pred_check
      _
    $region23: #{discriminator_forward.1} parent=1 // pred_check_branch
      %66 = sbr.rel (0) target = $region25
    $region24: #{discriminator_forward.1} parent=1 // pred_region
      %68 = dma.done [#allocation4], 128
    $region25: #{discriminator_forward.1} parent=1 // pred_fallthru
      _
    // Predicated region
    $region26: #{discriminator_forward.1} parent=1 // pred_check
      _
    $region27: #{discriminator_forward.1} parent=1 // pred_check_branch
      %70 = sbr.rel (0) target = $region29
    $region28: #{discriminator_forward.1} parent=1 // pred_region
      %72 = dma.done [#allocation7], 512
    $region29: #{discriminator_forward.1} parent=1 // pred_fallthru
      _
    // Predicated region
    $region30: #{discriminator_forward.1} parent=1 // pred_check
      _
    $region31: #{discriminator_forward.1} parent=1 // pred_check_branch
      %74 = sbr.rel (0) target = $region33
    $region32: #{discriminator_forward.1} parent=1 // pred_region
      %76 = dma.done [#allocation7], 512
    $region33: #{discriminator_forward.1} parent=1 // pred_fallthru
      _
    // Predicated region
    $region34: #{discriminator_forward.1} parent=1 // pred_check
      _
    $region35: #{discriminator_forward.1} parent=1 // pred_check_branch
      %78 = sbr.rel (0) target = $region37
    $region36: #{discriminator_forward.1} parent=1 // pred_region
      %80 = dma.done [#allocation10], 128
    $region37: #{discriminator_forward.1} parent=1 // pred_fallthru
      _
    %v81 = vld [vmem:[#allocation9] sm:$0x1f]
    %s82 = sld [smem:[#allocation2]]
    %v83 = vld [vmem:[#allocation3] sm:$0xff]
    %v84 = vld [vmem:[#allocation6] sm:$0xff]
    %v85 = vld [vmem:[#allocation6 + $0x8] sm:$0xff]
    %v86 = vld [vmem:[#allocation6 + $0x10] sm:$0xff]
    %v87 = vld [vmem:[#allocation6 + $0x18] sm:$0xff]
    %vm88 = vcmask 261120
    %v90 = vsel %vm88, %v83, 0
    %92 = vmatpush.msra.mxu0 0.0
    %93 = vmatpush.msra.mxu0 0.0
    %94 = vmatpush.msra.mxu0 0.0
    %95 = vmatpush.msra.mxu0 0.0
    %96 = vmatpush.msra.mxu0 0.0
    %97 = vmatpush.msra.mxu0 0.0
    %98 = vmatpush.msra.mxu0 0.0
    %99 = vmatpush.msra.mxu0 0.0
    %100 = vmatpush.msra.mxu0 0.0
    %101 = vmatpush.msra.mxu0 0.0
    %102 = vmatpush.msra.mxu0 0.0
    %103 = vmatpush.msra.mxu0 0.0
    %104 = vmatpush.msra.mxu0 %v87
    %105 = vmatpush.msra.mxu0 %v86
    %106 = vmatpush.msra.mxu0 %v85
    %107 = vmatpush.msra.mxu0 %v84
    %108 = vmatmul.f32.gmra.mxu0 %v90
    %v109 = vpop.f32.mrf.mxu0
    %v110 = vadd.f32 0.0, %v109
    %111 = vdwg.mxu0
    %vm112 = vcmask 64512
    %v114 = vsel %vm112, 1.0, 0
    %116 = vmatpush.msra.mxu0 0.0
    %117 = vmatpush.msra.mxu0 0.0
    %118 = vmatpush.msra.mxu0 0.0
    %119 = vmatpush.msra.mxu0 0.0
    %120 = vmatpush.msra.mxu0 0.0
    %121 = vmatpush.msra.mxu0 0.0
    %122 = vmatpush.msra.mxu0 0.0
    %123 = vmatpush.msra.mxu0 0.0
    %124 = vmatpush.msra.mxu0 0.0
    %125 = vmatpush.msra.mxu0 0.0
    %126 = vmatpush.msra.mxu0 0.0
    %127 = vmatpush.msra.mxu0 0.0
    %128 = vmatpush.msra.mxu0 0.0
    %129 = vmatpush.msra.mxu0 0.0
    %130 = vmatpush.msra.mxu0 0.0
    %131 = vmatpush.msra.mxu0 %v110
    %132 = vmatmul.f32.gmra.mxu0 %v114
    %v133 = vpop.f32.mrf.mxu0
    %v134 = vadd.f32 0.0, %v133
    %135 = vdwg.mxu0
    %v136 = vmul.f32 %v110, %v110
    %137 = vmatpush.msra.mxu0 0.0
    %138 = vmatpush.msra.mxu0 0.0
    %139 = vmatpush.msra.mxu0 0.0
    %140 = vmatpush.msra.mxu0 0.0
    %141 = vmatpush.msra.mxu0 0.0
    %142 = vmatpush.msra.mxu0 0.0
    %143 = vmatpush.msra.mxu0 0.0
    %144 = vmatpush.msra.mxu0 0.0
    %145 = vmatpush.msra.mxu0 0.0
    %146 = vmatpush.msra.mxu0 0.0
    %147 = vmatpush.msra.mxu0 0.0
    %148 = vmatpush.msra.mxu0 0.0
    %149 = vmatpush.msra.mxu0 0.0
    %150 = vmatpush.msra.mxu0 0.0
    %151 = vmatpush.msra.mxu0 0.0
    %152 = vmatpush.msra.mxu0 %v136
    %153 = vmatmul.f32.gmra.mxu0 %v114
    %v154 = vpop.f32.mrf.mxu0
    %v155 = vadd.f32 0.0, %v154
    %156 = vdwg.mxu0
    %v157 = vmul.f32 %v134, 0.125
    %v158 = vmul.f32 %v155, 0.125
    %v159 = vmul.f32 %v157, %v157
    %v160 = vsub.f32 %v158, %v159
    %v161 = vmax.f32 %v160, 0.0
    %v162 = vadd.f32 %v161, 1e-05
    %v163 = vrsqrt.pop %v162
    %v164 = vmul.f32 %v163, %v162
    %v165 = vmul.f32 %v164, %v163
    %v166 = vmul.f32 0.5, %v165
    %v167 = vsub.f32 1.5, %v166
    %v168 = vmul.f32 %v163, %v167
    %vm169 = vweird.f32 %v162
    %vm170 = vweird.f32 %v163
    %vm171 = vmor %vm169, %vm170
    %v172 = vsel %vm171, %v163, %v168
    %v173 = vmul.f32 %v81, %v172
    %v174 = vmul.f32 %v157, %v173
    %v176 = vrot.slane %v174, 7
    %v178 = vsub.f32 %v81, %v176
    %v179 = vperm.slane %v173, 0
    %v180 = vmul.f32 %v110, %v179
    %v181 = vperm.slane %v178, 1
    %v182 = vadd.f32 %v180, %v181
    %v183 = vmax.f32 %v182, 0.0
    %v184 = vld [vmem:[#allocation8] sm:$0xff]
    %v185 = vld [vmem:[#allocation8 + $0x8] sm:$0xff]
    %v186 = vld [vmem:[#allocation8 + $0x10] sm:$0xff]
    %v187 = vld [vmem:[#allocation8 + $0x18] sm:$0xff]
    %v189 = vsel %vm88, %v183, 0
    %191 = vmatpush.msra.mxu0 0.0
    %192 = vmatpush.msra.mxu0 0.0
    %193 = vmatpush.msra.mxu0 0.0
    %194 = vmatpush.msra.mxu0 0.0
    %195 = vmatpush.msra.mxu0 0.0
    %196 = vmatpush.msra.mxu0 0.0
    %197 = vmatpush.msra.mxu0 0.0
    %198 = vmatpush.msra.mxu0 0.0
    %199 = vmatpush.msra.mxu0 0.0
    %200 = vmatpush.msra.mxu0 0.0
    %201 = vmatpush.msra.mxu0 0.0
    %202 = vmatpush.msra.mxu0 0.0
    %203 = vmatpush.msra.mxu0 %v187
    %204 = vmatpush.msra.mxu0 %v186
    %205 = vmatpush.msra.mxu0 %v185
    %206 = vmatpush.msra.mxu0 %v184
    %207 = vmatmul.f32.gmra.mxu0 %v189
    %v208 = vpop.f32.mrf.mxu0
    %v209 = vadd.f32 0.0, %v208
    %210 = vdwg.mxu0
    %211 = vmatpush.msra.mxu0 0.0
    %212 = vmatpush.msra.mxu0 0.0
    %213 = vmatpush.msra.mxu0 0.0
    %214 = vmatpush.msra.mxu0 0.0
    %215 = vmatpush.msra.mxu0 0.0
    %216 = vmatpush.msra.mxu0 0.0
    %217 = vmatpush.msra.mxu0 0.0
    %218 = vmatpush.msra.mxu0 0.0
    %219 = vmatpush.msra.mxu0 0.0
    %220 = vmatpush.msra.mxu0 0.0
    %221 = vmatpush.msra.mxu0 0.0
    %222 = vmatpush.msra.mxu0 0.0
    %223 = vmatpush.msra.mxu0 0.0
    %224 = vmatpush.msra.mxu0 0.0
    %225 = vmatpush.msra.mxu0 0.0
    %226 = vmatpush.msra.mxu0 %v209
    %227 = vmatmul.f32.gmra.mxu0 %v114
    %v228 = vpop.f32.mrf.mxu0
    %v229 = vadd.f32 0.0, %v228
    %230 = vdwg.mxu0
    %v231 = vmul.f32 %v209, %v209
    %232 = vmatpush.msra.mxu0 0.0
    %233 = vmatpush.msra.mxu0 0.0
    %234 = vmatpush.msra.mxu0 0.0
    %235 = vmatpush.msra.mxu0 0.0
    %236 = vmatpush.msra.mxu0 0.0
    %237 = vmatpush.msra.mxu0 0.0
    %238 = vmatpush.msra.mxu0 0.0
    %239 = vmatpush.msra.mxu0 0.0
    %240 = vmatpush.msra.mxu0 0.0
    %241 = vmatpush.msra.mxu0 0.0
    %242 = vmatpush.msra.mxu0 0.0
    %243 = vmatpush.msra.mxu0 0.0
    %244 = vmatpush.msra.mxu0 0.0
    %245 = vmatpush.msra.mxu0 0.0
    %246 = vmatpush.msra.mxu0 0.0
    %247 = vmatpush.msra.mxu0 %v231
    %248 = vmatmul.f32.gmra.mxu0 %v114
    %v249 = vpop.f32.mrf.mxu0
    %v250 = vadd.f32 0.0, %v249
    %251 = vdwg.mxu0
    %v252 = vmul.f32 %v229, 0.125
    %v253 = vmul.f32 %v250, 0.125
    %v254 = vmul.f32 %v252, %v252
    %v255 = vsub.f32 %v253, %v254
    %v256 = vmax.f32 %v255, 0.0
    %v257 = vadd.f32 %v256, 1e-05
    %v258 = vrsqrt.pop %v257
    %v259 = vmul.f32 %v258, %v257
    %v260 = vmul.f32 %v259, %v258
    %v261 = vmul.f32 0.5, %v260
    %v262 = vsub.f32 1.5, %v261
    %v263 = vmul.f32 %v258, %v262
    %vm264 = vweird.f32 %v257
    %vm265 = vweird.f32 %v258
    %vm266 = vmor %vm264, %vm265
    %v267 = vsel %vm266, %v258, %v263
    %v269 = vrot.slane %v267, 6
    %v271 = vmul.f32 %v81, %v269
    %v273 = vrot.slane %v271, 2
    %v275 = vmul.f32 %v252, %v273
    %v277 = vrot.slane %v275, 5
    %v279 = vsub.f32 %v81, %v277
    %v280 = vperm.slane %v271, 2
    %v281 = vmul.f32 %v209, %v280
    %v282 = vperm.slane %v279, 3
    %v283 = vadd.f32 %v281, %v282
    %v284 = vmax.f32 %v283, 0.0
    %v285 = vstv %s82
    %v287 = vrot.slane %v81, 4
    %v288 = vsel %vm88, %v287, 0
    %v291 = vsel %vm88, %v284, 0
    %293 = vmatpush.xpose.msra.mxu0 0.0
    %294 = vmatpush.xpose.msra.mxu0 0.0
    %295 = vmatpush.xpose.msra.mxu0 0.0
    %296 = vmatpush.xpose.msra.mxu0 0.0
    %297 = vmatpush.xpose.msra.mxu0 0.0
    %298 = vmatpush.xpose.msra.mxu0 0.0
    %299 = vmatpush.xpose.msra.mxu0 0.0
    %300 = vmatpush.xpose.msra.mxu0 0.0
    %301 = vmatpush.xpose.msra.mxu0 0.0
    %302 = vmatpush.xpose.msra.mxu0 0.0
    %303 = vmatpush.xpose.msra.mxu0 0.0
    %304 = vmatpush.xpose.msra.mxu0 0.0
    %305 = vmatpush.xpose.msra.mxu0 0.0
    %306 = vmatpush.xpose.msra.mxu0 0.0
    %307 = vmatpush.xpose.msra.mxu0 0.0
    %308 = vmatpush.xpose.msra.mxu0 %v291
    %309 = vmatmul.f32.gmra.mxu0 %v288
    %v310 = vpop.f32.mrf.mxu0
    %v311 = vadd.f32 %v285, %v310
    %312 = vdwg.mxu0
    %v313 = vmul.f32 %v311, 0.5
    %v314 = vtanh.pop %v313
    %v315 = vmul.f32 %v314, 0.5
    %v316 = vadd.f32 %v315, 0.5
    %vm317 = vcmask 57344
    %318 = vst.msk [vmem:[#allocation11] sm:$0x1] %vm317, %v316
    // Predicated region
    $region38: #{discriminator_forward.1} parent=1 // pred_check
      _
    $region39: #{discriminator_forward.1} parent=1 // pred_check_branch
      %320 = sbr.rel (0) target = $region41
    $region40: #{discriminator_forward.1} parent=1 // pred_region
      %322 = vsyncadd [#allocation5], 0
      %s324 = sshll.u32 [#allocation11], 4
      %s325 = int_to_ptr.vmem [resolvable:$true] %s324
      %s326 = sshll.u32 %s5, 4
      %s327 = int_to_ptr.hbm [resolvable:$true] %s326
      %329 = dma.vmem_to_hbm [thread:$0]  %s325, 16, %s327, [#allocation5]
    $region41: #{discriminator_forward.1} parent=1 // pred_fallthru
      _
    // Predicated region
    $region42: #{discriminator_forward.1} parent=1 // pred_check
      _
    $region43: #{discriminator_forward.1} parent=1 // pred_check_branch
      %331 = sbr.rel (0) target = $region45
    $region44: #{discriminator_forward.1} parent=1 // pred_region
      %333 = dma.done [#allocation5], 16
    $region45: #{discriminator_forward.1} parent=1 // pred_fallthru
      _
    %334 = vsyncpa [#allocation4], 1
    %335 = vsyncpa [#allocation7], 1
    %336 = vsyncpa [#allocation10], 1
    %337 = vsyncpa [#allocation5], 1

</llo_original>
